<compile_context>
chip_gen: v6e
topology: v6e:2x2x1
jax: 0.10.0
libtpu: 0.0.40
codegen_flags: <defaults>
</compile_context>

<pallas_src>
import functools

import jax
import jax.numpy as jnp
from jax.experimental import pallas as pl
from jax.experimental.pallas import tpu as pltpu


def _cnn_output_kernel(x_ref, w_ref, b_ref, o_ref, acc_ref, *,
                       t_n, c, chunk, n_chunks, inv_hw):
    # x_ref  : (t_rows, t_hw)  activation tile (native dtype), t_rows = t_n * c
    # w_ref  : (c, K) f32      FC weight (pre-transposed from torch layout)
    # b_ref  : (1, K) f32      FC bias
    # o_ref  : (t_n, K)        output tile (same block across the HW axis)
    # acc_ref: VMEM (t_rows, chunk) f32  lane-wide running spatial sum
    k = pl.program_id(1)

    @pl.when(k == 0)
    def _init():
        acc_ref[...] = jnp.zeros_like(acc_ref)

    # Per-step path: pure loads + VPU adds (no cross-lane reduce, no narrow store).
    x = x_ref[...].astype(jnp.float32)                     # (t_rows, t_hw)
    part = x[:, 0:chunk]
    for j in range(1, n_chunks):
        part = part + x[:, j * chunk:(j + 1) * chunk]
    acc_ref[...] += part

    @pl.when(k == pl.num_programs(1) - 1)
    def _finalize():
        n_classes = w_ref.shape[1]
        out = jnp.zeros((t_n, n_classes), jnp.float32)
        # Rows are sample-major / channel-minor after the (N*C, HW) flatten, so
        # channel ci's rows are a sublane-strided slice (stride = C) of the
        # accumulator.  One XLU lane-reduce per channel, once per row block.
        for ci in range(c):
            ch_rows = acc_ref[pl.ds(ci, t_n, stride=c), :]      # (t_n, chunk)
            col = jnp.sum(ch_rows, axis=-1, keepdims=True)      # (t_n, 1)
            out = out + col * w_ref[ci:ci + 1, :]               # (1, K) broadcast
        o_ref[...] = (out * inv_hw + b_ref[...]).astype(o_ref.dtype)


def _vmem_capacity_bytes():
    try:
        info = pltpu.get_tpu_info()
        cap = getattr(info, "vmem_capacity_bytes", None)
        if cap:
            return int(cap)
    except Exception:
        pass
    return 64 * 1024 * 1024  # conservative default (v7x-sized VMEM)


def _pick_n_tile(n, c, max_rows=2048):
    # Row block holds t_n samples (t_n * c rows of the flattened slab).  Require
    # t_n to be a multiple of 8 so both the x row block and the (t_n, K) output
    # block satisfy the sublane tiling rule, and prefer >= 2 row blocks so the
    # "parallel" axis can shard across v7x's two TensorCores.
    cand = [d for d in range(8, n, 8) if n % d == 0 and d * c <= max_rows]
    if cand:
        return max(cand)
    return n  # full-extent fallback (always a legal block shape)


def _pick_hw_tile(hw, t_rows, itemsize, budget_bytes):
    # Largest 128-multiple tile that divides HW, leaves >= 2 pipeline steps, and
    # keeps the double-buffered, sublane-padded x footprint under budget.
    pad_rows = ((t_rows + 7) // 8) * 8
    for t in (16384, 8192, 4096, 2048, 1024, 512, 256, 128):
        if hw % t == 0 and hw // t >= 2 and 2 * pad_rows * t * itemsize <= budget_bytes:
            return t
    return hw  # full-extent fallback (small heads, e.g. 7x7 = 49)


def _pick_chunk(t_hw):
    # Accumulator lane width: a 128-multiple chunk keeps the per-step body pure
    # vadd over lane-aligned slices while keeping the scratch small.
    for cw in (512, 256, 128):
        if t_hw % cw == 0:
            return cw
    return t_hw


def cnn_output(x, weight, bias):
    """x: (N, C, H, W); weight: (n_classes, C) (torch layout); bias: (n_classes,)."""
    n, c, h, w = x.shape
    n_classes = weight.shape[0]
    hw = h * w

    if not jnp.issubdtype(x.dtype, jnp.floating):
        x = x.astype(jnp.float32)
    out_dtype = x.dtype

    # Lane-dense flatten: rows = (sample, channel) pairs, lanes = spatial.  x keeps
    # its native dtype; the tiny weight/bias layout ops stay in the wrapper.
    x2d = x.reshape(n * c, hw)
    w_t = weight.astype(jnp.float32).T                      # (C, K)
    b2d = bias.astype(jnp.float32).reshape(1, n_classes)    # (1, K)

    itemsize = x2d.dtype.itemsize
    vmem_cap = _vmem_capacity_bytes()
    x_budget = (3 * vmem_cap) // 8                 # ~24 MiB on v7x, ~48 MiB on v5e/v6e
    vmem_limit = min((5 * vmem_cap) // 8, 96 * 1024 * 1024)

    t_n = _pick_n_tile(n, c)
    t_rows = t_n * c
    t_hw = _pick_hw_tile(hw, t_rows, itemsize, x_budget)
    chunk = _pick_chunk(t_hw)
    n_chunks = t_hw // chunk
    grid = (n // t_n, hw // t_hw)

    # Triple-buffer the x stream only when the HW tile is small enough that the
    # ~0.35 us per-step fixed cost / DMA issue latency is a visible fraction.
    x_spec_kwargs = {}
    if t_hw <= 512 and grid[1] >= 4:
        x_spec_kwargs["pipeline_mode"] = pl.Buffered(3)
    x_spec = pl.BlockSpec((t_rows, t_hw), lambda i, k: (i, k), **x_spec_kwargs)

    kernel = functools.partial(_cnn_output_kernel, t_n=t_n, c=c, chunk=chunk,
                               n_chunks=n_chunks, inv_hw=1.0 / float(hw))

    cost = pl.CostEstimate(
        flops=n * c * hw + 2 * n * c * n_classes + n * n_classes,
        transcendentals=0,
        bytes_accessed=(n * c * hw * itemsize
                        + 4 * (c * n_classes + n_classes)
                        + n * n_classes * jnp.dtype(out_dtype).itemsize),
    )

    return pl.pallas_call(
        kernel,
        out_shape=jax.ShapeDtypeStruct((n, n_classes), out_dtype),
        grid_spec=pltpu.PrefetchScalarGridSpec(
            num_scalar_prefetch=0,
            grid=grid,
            in_specs=[
                x_spec,
                pl.BlockSpec((c, n_classes), lambda i, k: (0, 0)),
                pl.BlockSpec((1, n_classes), lambda i, k: (0, 0)),
            ],
            # Same output block index across the HW axis -> accumulator pattern;
            # written back once per row block after the last HW step.
            out_specs=pl.BlockSpec((t_n, n_classes), lambda i, k: (i, 0)),
            scratch_shapes=[pltpu.VMEM((t_rows, chunk), jnp.float32)],
        ),
        compiler_params=pltpu.CompilerParams(
            dimension_semantics=("parallel", "arbitrary"),
            vmem_limit_bytes=vmem_limit,
        ),
        cost_estimate=cost,
    )(x2d, w_t, b2d)


if __name__ == "__main__":
    # Small shapes consistent with the module: inc=4 channels, n_classes=8.
    N, C, H, W = 2, 4, 16, 16
    N_CLASSES = 8

    key = jax.random.PRNGKey(0)
    kx, kw, kb = jax.random.split(key, 3)

    x = jax.random.normal(kx, (N, C, H, W), dtype=jnp.float32)

    # Deterministic init mimicking nn.Linear's default (uniform in +-1/sqrt(inc)).
    bound = 1.0 / (C ** 0.5)
    weight = jax.random.uniform(kw, (N_CLASSES, C), minval=-bound, maxval=bound,
                                dtype=jnp.float32)
    bias = jax.random.uniform(kb, (N_CLASSES,), minval=-bound, maxval=bound,
                              dtype=jnp.float32)

    out = jax.block_until_ready(cnn_output(x, weight, bias))

    # Pure-JAX reference of the same semantics (mean pool -> squeeze -> linear).
    ref = jnp.mean(x, axis=(2, 3)) @ weight.T + bias
    assert out.shape == (N, N_CLASSES)
    assert jnp.allclose(out, ref, atol=1e-5, rtol=1e-5), "mismatch vs reference"

    print("KERNEL_OK")
</pallas_src>

<mosaic_0001>
module attributes {stable_mosaic.version = 11 : i64} {
  func.func @_cnn_output_kernel(%arg0: i32, %arg1: i32, %arg2: memref<8x128xf32, #tpu.memory_space<vmem>>, %arg3: memref<4x8xf32, #tpu.memory_space<vmem>>, %arg4: memref<1x8xf32, #tpu.memory_space<vmem>>, %arg5: memref<2x8xf32, #tpu.memory_space<vmem>>, %arg6: memref<8x128xf32, #tpu.memory_space<vmem>>) attributes {dimension_semantics = [#tpu.dimension_semantics<parallel>, #tpu.dimension_semantics<arbitrary>], iteration_bounds = array<i64: 1, 2>, scalar_prefetch = 0 : i64, scratch_operands = 1 : i64, tpu.core_type = #tpu.core_type<tc>, window_params = [{transform_indices = @transform_0, window_bounds = array<i64: 8, 128>}, {pipeline_mode = #tpu.pipeline_mode<synchronous>, transform_indices = @transform_1, window_bounds = array<i64: 4, 8>}, {pipeline_mode = #tpu.pipeline_mode<synchronous>, transform_indices = @transform_2, window_bounds = array<i64: 1, 8>}, {transform_indices = @transform_3, window_bounds = array<i64: 2, 8>}]} {
    %c0_i32 = arith.constant 0 : i32
    %0 = arith.cmpi eq, %arg1, %c0_i32 : i32
    %1 = arith.extui %0 : i1 to i32
    %c0_i32_0 = arith.constant 0 : i32
    %2 = arith.cmpi ne, %1, %c0_i32_0 : i32
    scf.if %2 {
      %cst = arith.constant 0.000000e+00 : f32
      %10 = vector.broadcast %cst : f32 to vector<8x128xf32>
      %c0_7 = arith.constant 0 : index
      %c0_8 = arith.constant 0 : index
      %11 = vector.load %arg6[%c0_7, %c0_8] : memref<8x128xf32, #tpu.memory_space<vmem>>, vector<8x128xf32>
      tpu.vector_store %arg6[%c0_7, %c0_8], %10 {strides = array<i32>} : memref<8x128xf32, #tpu.memory_space<vmem>>, vector<8x128xf32>,
    } else {
    }
    %c0 = arith.constant 0 : index
    %c0_1 = arith.constant 0 : index
    %3 = vector.load %arg2[%c0, %c0_1] : memref<8x128xf32, #tpu.memory_space<vmem>>, vector<8x128xf32>
    %c0_2 = arith.constant 0 : index
    %c0_3 = arith.constant 0 : index
    %4 = vector.load %arg6[%c0_2, %c0_3] : memref<8x128xf32, #tpu.memory_space<vmem>>, vector<8x128xf32>
    %5 = arith.addf %4, %3 : vector<8x128xf32>
    %c0_4 = arith.constant 0 : index
    %c0_5 = arith.constant 0 : index
    %6 = vector.load %arg6[%c0_4, %c0_5] : memref<8x128xf32, #tpu.memory_space<vmem>>, vector<8x128xf32>
    tpu.vector_store %arg6[%c0_4, %c0_5], %5 {strides = array<i32>} : memref<8x128xf32, #tpu.memory_space<vmem>>, vector<8x128xf32>,
    %c1_i32 = arith.constant 1 : i32
    %7 = arith.cmpi eq, %arg1, %c1_i32 : i32
    %8 = arith.extui %7 : i1 to i32
    %c0_i32_6 = arith.constant 0 : i32
    %9 = arith.cmpi ne, %8, %c0_i32_6 : i32
    scf.if %9 {
      %cst = arith.constant 0.000000e+00 : f32
      %10 = vector.broadcast %cst : f32 to vector<2x8xf32>
      %c0_7 = arith.constant 0 : index
      %c0_8 = arith.constant 0 : index
      %11 = tpu.strided_load %arg6[%c0_7, %c0_8] {strides = array<i32: 4, 1>} : memref<8x128xf32, #tpu.memory_space<vmem>>, vector<2x128xf32>
      %cst_9 = arith.constant dense<0.000000e+00> : vector<2xf32>
      %12 = vector.multi_reduction <add>, %11, %cst_9 [1] : vector<2x128xf32> to vector<2xf32>
      %13 = vector.shape_cast %12 : vector<2xf32> to vector<2x1xf32>
      %c0_10 = arith.constant 0 : index
      %c0_11 = arith.constant 0 : index
      %14 = vector.load %arg3[%c0_10, %c0_11] : memref<4x8xf32, #tpu.memory_space<vmem>>, vector<1x8xf32>
      %15 = vector.broadcast %13 : vector<2x1xf32> to vector<2x8xf32>
      %16 = vector.broadcast %14 : vector<1x8xf32> to vector<2x8xf32>
      %17 = arith.mulf %15, %16 : vector<2x8xf32>
      %18 = arith.addf %10, %17 : vector<2x8xf32>
      %c1 = arith.constant 1 : index
      %c0_12 = arith.constant 0 : index
      %19 = tpu.strided_load %arg6[%c1, %c0_12] {strides = array<i32: 4, 1>} : memref<8x128xf32, #tpu.memory_space<vmem>>, vector<2x128xf32>
      %cst_13 = arith.constant dense<0.000000e+00> : vector<2xf32>
      %20 = vector.multi_reduction <add>, %19, %cst_13 [1] : vector<2x128xf32> to vector<2xf32>
      %21 = vector.shape_cast %20 : vector<2xf32> to vector<2x1xf32>
      %c1_14 = arith.constant 1 : index
      %c0_15 = arith.constant 0 : index
      %22 = vector.load %arg3[%c1_14, %c0_15] : memref<4x8xf32, #tpu.memory_space<vmem>>, vector<1x8xf32>
      %23 = vector.broadcast %21 : vector<2x1xf32> to vector<2x8xf32>
      %24 = vector.broadcast %22 : vector<1x8xf32> to vector<2x8xf32>
      %25 = arith.mulf %23, %24 : vector<2x8xf32>
      %26 = arith.addf %18, %25 : vector<2x8xf32>
      %c2 = arith.constant 2 : index
      %c0_16 = arith.constant 0 : index
      %27 = tpu.strided_load %arg6[%c2, %c0_16] {strides = array<i32: 4, 1>} : memref<8x128xf32, #tpu.memory_space<vmem>>, vector<2x128xf32>
      %cst_17 = arith.constant dense<0.000000e+00> : vector<2xf32>
      %28 = vector.multi_reduction <add>, %27, %cst_17 [1] : vector<2x128xf32> to vector<2xf32>
      %29 = vector.shape_cast %28 : vector<2xf32> to vector<2x1xf32>
      %c2_18 = arith.constant 2 : index
      %c0_19 = arith.constant 0 : index
      %30 = vector.load %arg3[%c2_18, %c0_19] : memref<4x8xf32, #tpu.memory_space<vmem>>, vector<1x8xf32>
      %31 = vector.broadcast %29 : vector<2x1xf32> to vector<2x8xf32>
      %32 = vector.broadcast %30 : vector<1x8xf32> to vector<2x8xf32>
      %33 = arith.mulf %31, %32 : vector<2x8xf32>
      %34 = arith.addf %26, %33 : vector<2x8xf32>
      %c3 = arith.constant 3 : index
      %c0_20 = arith.constant 0 : index
      %35 = tpu.strided_load %arg6[%c3, %c0_20] {strides = array<i32: 4, 1>} : memref<8x128xf32, #tpu.memory_space<vmem>>, vector<2x128xf32>
      %cst_21 = arith.constant dense<0.000000e+00> : vector<2xf32>
      %36 = vector.multi_reduction <add>, %35, %cst_21 [1] : vector<2x128xf32> to vector<2xf32>
      %37 = vector.shape_cast %36 : vector<2xf32> to vector<2x1xf32>
      %c3_22 = arith.constant 3 : index
      %c0_23 = arith.constant 0 : index
      %38 = vector.load %arg3[%c3_22, %c0_23] : memref<4x8xf32, #tpu.memory_space<vmem>>, vector<1x8xf32>
      %39 = vector.broadcast %37 : vector<2x1xf32> to vector<2x8xf32>
      %40 = vector.broadcast %38 : vector<1x8xf32> to vector<2x8xf32>
      %41 = arith.mulf %39, %40 : vector<2x8xf32>
      %42 = arith.addf %34, %41 : vector<2x8xf32>
      %cst_24 = arith.constant 3.906250e-03 : f32
      %43 = vector.broadcast %cst_24 : f32 to vector<2x8xf32>
      %44 = arith.mulf %42, %43 : vector<2x8xf32>
      %c0_25 = arith.constant 0 : index
      %c0_26 = arith.constant 0 : index
      %45 = vector.load %arg4[%c0_25, %c0_26] : memref<1x8xf32, #tpu.memory_space<vmem>>, vector<1x8xf32>
      %46 = vector.broadcast %45 : vector<1x8xf32> to vector<2x8xf32>
      %47 = arith.addf %44, %46 : vector<2x8xf32>
      %c0_27 = arith.constant 0 : index
      %c0_28 = arith.constant 0 : index
      %48 = vector.load %arg5[%c0_27, %c0_28] : memref<2x8xf32, #tpu.memory_space<vmem>>, vector<2x8xf32>
      tpu.vector_store %arg5[%c0_27, %c0_28], %47 {strides = array<i32>} : memref<2x8xf32, #tpu.memory_space<vmem>>, vector<2x8xf32>,
    } else {
    }
    return
  }
  func.func @transform_0(%arg0: i32, %arg1: i32) -> (i32, i32) {
    %c0_i32 = arith.constant 0 : i32
    return %arg0, %arg1 : i32, i32
  }
  func.func @transform_1(%arg0: i32, %arg1: i32) -> (i32, i32) {
    %c0_i32 = arith.constant 0 : i32
    %c0_i32_0 = arith.constant 0 : i32
    %c0_i32_1 = arith.constant 0 : i32
    return %c0_i32, %c0_i32_0 : i32, i32
  }
  func.func @transform_2(%arg0: i32, %arg1: i32) -> (i32, i32) {
    %c0_i32 = arith.constant 0 : i32
    %c0_i32_0 = arith.constant 0 : i32
    %c0_i32_1 = arith.constant 0 : i32
    return %c0_i32, %c0_i32_0 : i32, i32
  }
  func.func @transform_3(%arg0: i32, %arg1: i32) -> (i32, i32) {
    %c0_i32 = arith.constant 0 : i32
    %c0_i32_0 = arith.constant 0 : i32
    return %arg0, %c0_i32 : i32, i32
  }
}

</mosaic_0001>

<llo_original>
// kernel: tpu_custom_call.1
$region0: #{tpu_custom_call.1}
  #allocation0 [shape = 'u32[]', space=smem, size = 0x4, offset = 0x4, fixed_abs, tag = 'smem constant byte address 0x4 - core index']
  #allocation1 [shape = 'u32[144,128]{1,0:T(1,128)}', space=vmem, size = 0x12000, scoped, tag = 'internal scratch']
  #allocation2 [shape = 'f32[8,128]{1,0:T(8,128)}', space=vmem, size = 0x1000, scoped, tag = 'scratch operand']
  %s0 = inlined_call_operand.hbm [shape: f32[8,256], index: 0, kind: input, shape index: {}]
  %s1 = inlined_call_operand.hbm [shape: f32[4,8], index: 1, kind: input, shape index: {}]
  %s2 = inlined_call_operand.vmem [shape: f32[1,8], index: 2, kind: input, shape index: {}]
  %s3 = inlined_call_operand.hbm [shape: f32[2,8], index: 3, kind: output, shape index: {}]
  %s4 = sld [smem:[#allocation0]]
  $region61: #{tpu_custom_call.1} parent=0
    _
  %s6 = ssub.s32 1, %s4
  %s7 = scalar_select 0, %s6, %s4
  $region1: #{tpu_custom_call.1} parent=0
    #allocation3 [shape = 'u8[8192]{0}', space=vmem, size = 0x2000, scoped, tag = 'input window, operand 0']
    #allocation4 [shape = 's32[2]{0}', space=sflag, size = 0x8, scoped, tag = 'scoped memory for tpu_custom_call.1']
    #allocation5 [shape = 's32[2]{0}', space=sflag, size = 0x8, scoped, tag = 'scoped memory for tpu_custom_call.1']
    #allocation6 [shape = 'u8[2048]{0}', space=vmem, size = 0x800, scoped, tag = 'input window, operand 1, single buffered']
    #allocation7 [shape = 's32[1]{0}', space=sflag, size = 0x4, scoped, tag = 'scoped memory for tpu_custom_call.1']
    #allocation8 [shape = 'u8[1024]{0}', space=vmem, size = 0x400, scoped, tag = 'output window, operand 0, single buffered']
    %8 = vsyncpa [#allocation4], 0
    %s9 = scalar_lea.sflag [#allocation4], 1
    %10 = vsyncpa %s9, 0
    %11 = vsyncpa [#allocation7], 0
    %12 = vsyncpa [#allocation5], 0
    loop: start=0, step=1, limit=4
    $region2: #{tpu_custom_call.1} parent=1 // loop_pre_header
      _
    $region3: #{tpu_custom_call.1} parent=1 // loop_header
      %s14 = sphi 0, %s18
      %p15 = scmp.ge.s32.totalorder %s14, 4
      %s21 = sphi 0, %s33
      %s22 = sphi 0, %s29
      %s23 = sphi 0, %s21
      %s24 = sphi 0, %s22
      %s25 = sphi 0, %s23
      %s26 = sphi 0, %s24
      %s38 = sphi 0, %s40
      %s41 = sphi 0, %s38
      %s42 = sphi 0, %s41
      %s58 = sphi 0, %s42
      %s62 = sphi 0, %s62
      %s64 = sphi 0, %s62
      %s65 = sphi 0, %s64
      %s79 = sphi 0, %s65
      %s83 = sphi 0, %s83
      %s85 = sphi 0, %s83
      %s86 = sphi 0, %s85
      %s100 = sphi 0, %s86
      %s106 = sphi 0, %s108
      %s109 = sphi 0, %s106
      %s110 = sphi 0, %s109
      %s126 = sphi 0, %s110
    $region4: #{tpu_custom_call.1} parent=1 // loop_header_branch
      %17 = sbr.rel (%p15) target = $region8
    $region5: #{tpu_custom_call.1} parent=1 // loop_body
      %s19 = ssub.s32 %s14, 1
      %s20 = ssub.s32 %s14, 2
      %s27 = sadd.s32 1, %s22
      %p28 = scmp.ge.s32.totalorder %s27, 2
      %s29 = scalar_select %p28, 0, %s27
      %s30 = sadd.s32 1, %s21
      %s31 = scalar_select %p28, %s30, %s21
      %p32 = scmp.ge.s32.totalorder %s31, 1
      %s33 = scalar_select %p32, 0, %s31
      %s34 = ssub.s32 %s21, %s33
      %s35 = ssub.s32 %s22, %s29
      %s36 = sor.u32 %s34, %s35
      %p37 = scmp.eq.s32.totalorder %s36, 0
      %s39 = sadd.s32 %s38, 1
      %s40 = scalar_select %p37, %s38, %s39
      %p43 = pneg %p37
      %p44 = scmp.eq.s32.totalorder %s14, 1
      %p45 = por %p43, %p44
      %p46 = scmp.ne.s32.totalorder %s38, %s41
      %p47 = scmp.eq.s32.totalorder %s14, 0
      %p48 = por %p46, %p47
      %p49 = scmp.ne.s32.totalorder %s38, %s41
      %p50 = scmp.eq.s32.totalorder %s19, 1
      %p51 = por %p49, %p50
      %p52 = scmp.ne.s32.totalorder %s41, %s42
      %p53 = scmp.eq.s32.totalorder %s19, 0
      %p54 = por %p52, %p53
      %p55 = scmp.ne.s32.totalorder %s41, %s42
      %p56 = scmp.eq.s32.totalorder %s20, 1
      %p57 = por %p55, %p56
      %p59 = scmp.ne.s32.totalorder %s42, %s58
      %p60 = scmp.eq.s32.totalorder %s20, 0
      %p61 = por %p59, %p60
      %s63 = sadd.s32 %s62, 1
      %p66 = scmp.eq.s32.totalorder %s14, 1
      %p67 = scmp.ne.s32.totalorder %s62, %s64
      %p68 = scmp.eq.s32.totalorder %s14, 0
      %p69 = por %p67, %p68
      %p70 = scmp.ne.s32.totalorder %s62, %s64
      %p71 = scmp.eq.s32.totalorder %s19, 1
      %p72 = por %p70, %p71
      %p73 = scmp.ne.s32.totalorder %s64, %s65
      %p74 = scmp.eq.s32.totalorder %s19, 0
      %p75 = por %p73, %p74
      %p76 = scmp.ne.s32.totalorder %s64, %s65
      %p77 = scmp.eq.s32.totalorder %s20, 1
      %p78 = por %p76, %p77
      %p80 = scmp.ne.s32.totalorder %s65, %s79
      %p81 = scmp.eq.s32.totalorder %s20, 0
      %p82 = por %p80, %p81
      %s84 = sadd.s32 %s83, 1
      %p87 = scmp.eq.s32.totalorder %s14, 1
      %p88 = scmp.ne.s32.totalorder %s83, %s85
      %p89 = scmp.eq.s32.totalorder %s14, 0
      %p90 = por %p88, %p89
      %p91 = scmp.ne.s32.totalorder %s83, %s85
      %p92 = scmp.eq.s32.totalorder %s19, 1
      %p93 = por %p91, %p92
      %p94 = scmp.ne.s32.totalorder %s85, %s86
      %p95 = scmp.eq.s32.totalorder %s19, 0
      %p96 = por %p94, %p95
      %p97 = scmp.ne.s32.totalorder %s85, %s86
      %p98 = scmp.eq.s32.totalorder %s20, 1
      %p99 = por %p97, %p98
      %p101 = scmp.ne.s32.totalorder %s86, %s100
      %p102 = scmp.eq.s32.totalorder %s20, 0
      %p103 = por %p101, %p102
      %s104 = ssub.s32 %s21, %s33
      %p105 = scmp.eq.s32.totalorder %s104, 0
      %s107 = sadd.s32 %s106, 1
      %s108 = scalar_select %p105, %s106, %s107
      %p111 = pneg %p105
      %p112 = scmp.eq.s32.totalorder %s14, 1
      %p113 = por %p111, %p112
      %p114 = scmp.ne.s32.totalorder %s106, %s109
      %p115 = scmp.eq.s32.totalorder %s14, 0
      %p116 = por %p114, %p115
      %p117 = scmp.ne.s32.totalorder %s106, %s109
      %p118 = scmp.eq.s32.totalorder %s19, 1
      %p119 = por %p117, %p118
      %p120 = scmp.ne.s32.totalorder %s109, %s110
      %p121 = scmp.eq.s32.totalorder %s19, 0
      %p122 = por %p120, %p121
      %p123 = scmp.ne.s32.totalorder %s109, %s110
      %p124 = scmp.eq.s32.totalorder %s20, 1
      %p125 = por %p123, %p124
      %p127 = scmp.ne.s32.totalorder %s110, %s126
      %p128 = scmp.eq.s32.totalorder %s20, 0
      %p129 = por %p127, %p128
      %p130 = scmp.le.s32.totalorder 1, %s14
      %p131 = scmp.lt.s32.totalorder %s14, 3
      %p132 = pnand %p130, %p131
      %p133 = pneg %p132
      // Predicated region
      $region9: #{tpu_custom_call.1} parent=5 // pred_check
        _
      $region10: #{tpu_custom_call.1} parent=5 // pred_check_branch
        %135 = sbr.rel (%p132) target = $region12
      $region11: #{tpu_custom_call.1} parent=5 // pred_region
        %s136 = ssub.s32 %s14, 1
        // Predicated region
        $region13: #{tpu_custom_call.1} parent=11 // pred_check
          %p137 = pneg %p75
        $region14: #{tpu_custom_call.1} parent=11 // pred_check_branch
          %139 = sbr.rel (%p137) target = $region16
        $region15: #{tpu_custom_call.1} parent=11 // pred_region
          %s141 = ssub.s32 64, 64
          %142 = vsyncadd [#allocation7], %s141
          %s144 = sshll.u32 [#allocation6], 4
          %s145 = int_to_ptr.vmem [resolvable:$true] %s144
          %147 = dma.hbm_to_vmem [thread:$0]  %s1, 64, %s145, [#allocation7]
        $region16: #{tpu_custom_call.1} parent=11 // pred_fallthru
          _
        // Predicated region
        $region17: #{tpu_custom_call.1} parent=11 // pred_check
          %p148 = pneg %p96
        $region18: #{tpu_custom_call.1} parent=11 // pred_check_branch
          %150 = sbr.rel (%p148) target = $region20
        $region19: #{tpu_custom_call.1} parent=11 // pred_region
          _
        $region20: #{tpu_custom_call.1} parent=11 // pred_fallthru
          _
      $region12: #{tpu_custom_call.1} parent=5 // pred_fallthru
        _
      %p151 = scmp.lt.s32.totalorder %s14, 2
      // Predicated region
      $region21: #{tpu_custom_call.1} parent=5 // pred_check
        %p152 = pneg %p151
      $region22: #{tpu_custom_call.1} parent=5 // pred_check_branch
        %154 = sbr.rel (%p152) target = $region24
      $region23: #{tpu_custom_call.1} parent=5 // pred_region
        // Predicated region
        $region25: #{tpu_custom_call.1} parent=23 // pred_check
          %p155 = pneg %p48
        $region26: #{tpu_custom_call.1} parent=23 // pred_check_branch
          %157 = sbr.rel (%p155) target = $region28
        $region27: #{tpu_custom_call.1} parent=23 // pred_region
          %s158 = sand.u32 %s38, 1
          %s159 = scalar_lea.sflag [#allocation4], %s158
          %s160 = sand.u32 %s38, 1
          %s161 = smul.addr %s160, 8
          %s162 = scalar_lea.vmem [#allocation3], %s161
          %s164 = ssub.s32 128, 128
          %165 = vsyncadd %s159, %s164
          %s166 = smul.addr %s21, 2
          %s167 = sadd.s32 %s22, %s166
          %s168 = smul.addr %s167, 128
          %s169 = scalar_lea.hbm %s0, %s168
          %s171 = sshll.u32 %s162, 4
          %s172 = int_to_ptr.vmem [resolvable:$true] %s171
          %174 = dma.hbm_to_vmem [thread:$0]  %s169, 128, %s172, %s159
        $region28: #{tpu_custom_call.1} parent=23 // pred_fallthru
          _
      $region24: #{tpu_custom_call.1} parent=5 // pred_fallthru
        _
      %p175 = scmp.le.s32.totalorder 1, %s14
      %p176 = scmp.lt.s32.totalorder %s14, 3
      %p177 = pnand %p175, %p176
      %p178 = pneg %p177
      // Predicated region
      $region29: #{tpu_custom_call.1} parent=5 // pred_check
        _
      $region30: #{tpu_custom_call.1} parent=5 // pred_check_branch
        %180 = sbr.rel (%p177) target = $region32
      $region31: #{tpu_custom_call.1} parent=5 // pred_region
        %s181 = ssub.s32 %s14, 1
        %s182 = sand.u32 %s41, 1
        %s183 = scalar_lea.sflag [#allocation4], %s182
        %s184 = sand.u32 %s41, 1
        %s185 = smul.addr %s184, 8
        %s186 = scalar_lea.vmem [#allocation3], %s185
        // Predicated region
        $region33: #{tpu_custom_call.1} parent=31 // pred_check
          %p187 = pneg %p54
        $region34: #{tpu_custom_call.1} parent=31 // pred_check_branch
          %189 = sbr.rel (%p187) target = $region36
        $region35: #{tpu_custom_call.1} parent=31 // pred_region
          %190 = dma.done %s183, 128
        $region36: #{tpu_custom_call.1} parent=31 // pred_fallthru
          _
        // Predicated region
        $region37: #{tpu_custom_call.1} parent=31 // pred_check
          %p191 = pneg %p75
        $region38: #{tpu_custom_call.1} parent=31 // pred_check_branch
          %193 = sbr.rel (%p191) target = $region40
        $region39: #{tpu_custom_call.1} parent=31 // pred_region
          %194 = dma.done [#allocation7], 64
        $region40: #{tpu_custom_call.1} parent=31 // pred_fallthru
          _
        %s195 = sand.u32 %s41, 1
        %s196 = scalar_lea.sflag [#allocation4], %s195
        %s197 = sand.u32 %s41, 1
        %s198 = smul.addr %s197, 8
        %s199 = scalar_lea.vmem [#allocation3], %s198
        %p200 = pneg %p54
        %p201 = pneg %p51
        %p202 = pneg %p75
        %p203 = pneg %p72
        %p204 = pneg %p96
        %p205 = pneg %p93
        %p206 = pneg %p122
        %p207 = pneg %p119
        %p208 = scmp.eq.s32.totalorder %s24, 0
        // Predicated region
        $region41: #{tpu_custom_call.1} parent=31 // pred_check
          %p209 = pneg %p208
        $region42: #{tpu_custom_call.1} parent=31 // pred_check_branch
          %211 = sbr.rel (%p209) target = $region44
        $region43: #{tpu_custom_call.1} parent=31 // pred_region
          %212 = vst [vmem:[#allocation2] sm:$0xff] 0.0
        $region44: #{tpu_custom_call.1} parent=31 // pred_fallthru
          _
        %v213 = vld [vmem:[%s186] sm:$0xff]
        %v214 = vld [vmem:[#allocation2] sm:$0xff]
        %v215 = vadd.f32 %v214, %v213
        %216 = vst [vmem:[#allocation2] sm:$0xff] %v215
        %p217 = scmp.eq.s32.totalorder %s24, 1
        // Predicated region
        $region45: #{tpu_custom_call.1} parent=31 // pred_check
          %p218 = pneg %p217
        $region46: #{tpu_custom_call.1} parent=31 // pred_check_branch
          %220 = sbr.rel (%p218) target = $region48
        $region47: #{tpu_custom_call.1} parent=31 // pred_region
          %v221 = vld [vmem:[#allocation2] ss:$4 sm:$0x3]
          %vm222 = vcmask 1041408
          %v223 = vsel %vm222, %v221, 0.0
          %224 = vadd.xlane.f32.xlu0 %v223
          %v225 = vpop.xlane.xlu0 %224
          %v226 = vld [vmem:[#allocation6] sm:$0x1]
          %v227 = vlaneseq
          %v228 = vshrl.u32 %v227, 7
          %v229 = vsub.s32 0, %v228
          %v230 = vrot.slane %v226, %v229
          %v231 = vmul.f32 %v225, %v230
          %v232 = vadd.f32 %v231, 0.0
          %s233 = scalar_lea.vmem [#allocation2], 1
          %v234 = vld [vmem:[%s233] ss:$4 sm:$0x3]
          %v235 = vsel %vm222, %v234, 0.0
          %236 = vadd.xlane.f32.xlu0 %v235
          %v237 = vpop.xlane.xlu0 %236
          %v238 = vld [vmem:[#allocation6 + $0x1] sm:$0x1]
          %v239 = vlaneseq
          %v240 = vshrl.u32 %v239, 7
          %v241 = vsub.s32 0, %v240
          %v242 = vrot.slane %v238, %v241
          %v243 = vmul.f32 %v237, %v242
          %v244 = vadd.f32 %v232, %v243
          %s245 = scalar_lea.vmem [#allocation2], 2
          %v246 = vld [vmem:[%s245] ss:$4 sm:$0x3]
          %v247 = vsel %vm222, %v246, 0.0
          %248 = vadd.xlane.f32.xlu0 %v247
          %v249 = vpop.xlane.xlu0 %248
          %v250 = vld [vmem:[#allocation6 + $0x2] sm:$0x1]
          %v251 = vlaneseq
          %v252 = vshrl.u32 %v251, 7
          %v253 = vsub.s32 0, %v252
          %v254 = vrot.slane %v250, %v253
          %v255 = vmul.f32 %v249, %v254
          %v256 = vadd.f32 %v244, %v255
          %s257 = scalar_lea.vmem [#allocation2], 3
          %v258 = vld [vmem:[%s257] ss:$4 sm:$0x3]
          %v259 = vsel %vm222, %v258, 0.0
          %260 = vadd.xlane.f32.xlu0 %v259
          %v261 = vpop.xlane.xlu0 %260
          %v262 = vld [vmem:[#allocation6 + $0x3] sm:$0x1]
          %v263 = vlaneseq
          %v264 = vshrl.u32 %v263, 7
          %v265 = vsub.s32 0, %v264
          %v266 = vrot.slane %v262, %v265
          %v267 = vmul.f32 %v261, %v266
          %v268 = vadd.f32 %v256, %v267
          %v269 = vmul.f32 %v268, 0.00390625
          %v270 = vld [vmem:[%s2] sm:$0x1]
          %v272 = vlaneseq
          %v273 = vshrl.u32 %v272, 7
          %v274 = vsub.s32 0, %v273
          %v275 = vrot.slane %v270, %v274
          %v277 = vadd.f32 %v269, %v275
          %vm278 = vcmask 58368
          %279 = vst.msk [vmem:[#allocation8] sm:$0x3] %vm278, %v277
        $region48: #{tpu_custom_call.1} parent=31 // pred_fallthru
          _
        // Predicated region
        $region49: #{tpu_custom_call.1} parent=31 // pred_check
          %p280 = pneg %p119
        $region50: #{tpu_custom_call.1} parent=31 // pred_check_branch
          %282 = sbr.rel (%p280) target = $region52
        $region51: #{tpu_custom_call.1} parent=31 // pred_region
          %s284 = ssub.s32 32, 32
          %285 = vsyncadd [#allocation5], %s284
          %s286 = smul.addr %s23, 32
          %s287 = scalar_lea.hbm %s3, %s286
          %s289 = sshll.u32 [#allocation8], 4
          %s290 = int_to_ptr.vmem [resolvable:$true] %s289
          %292 = dma.vmem_to_hbm [thread:$0]  %s290, 32, %s287, [#allocation5]
        $region52: #{tpu_custom_call.1} parent=31 // pred_fallthru
          _
        // Predicated region
        $region53: #{tpu_custom_call.1} parent=31 // pred_check
          %p293 = pneg %p119
        $region54: #{tpu_custom_call.1} parent=31 // pred_check_branch
          %295 = sbr.rel (%p293) target = $region56
        $region55: #{tpu_custom_call.1} parent=31 // pred_region
          %296 = dma.done [#allocation5], 32
        $region56: #{tpu_custom_call.1} parent=31 // pred_fallthru
          _
      $region32: #{tpu_custom_call.1} parent=5 // pred_fallthru
        _
      %p297 = scmp.le.s32.totalorder 2, %s14
      // Predicated region
      $region57: #{tpu_custom_call.1} parent=5 // pred_check
        %p298 = pneg %p297
      $region58: #{tpu_custom_call.1} parent=5 // pred_check_branch
        %300 = sbr.rel (%p298) target = $region60
      $region59: #{tpu_custom_call.1} parent=5 // pred_region
        %s301 = ssub.s32 %s14, 2
      $region60: #{tpu_custom_call.1} parent=5 // pred_fallthru
        _
    $region6: #{tpu_custom_call.1} parent=1 // loop_footer
      %s18 = sadd.s32 1, %s14
    $region7: #{tpu_custom_call.1} parent=1 // loop_footer_branch
      %13 = sbr.rel target = $region3
    $region8: #{tpu_custom_call.1} parent=1 // loop_exit
      _
    %302 = vsyncpa [#allocation4], 1
    %s303 = scalar_lea.sflag [#allocation4], 1
    %304 = vsyncpa %s303, 1
    %305 = vsyncpa [#allocation7], 1
    %306 = vsyncpa [#allocation5], 1
    %s307 = scalar_lea.sflag [#allocation5], 1
    %308 = vsyncpa %s307, 1

</llo_original>
